<compile_context>
chip_gen: v6e
topology: v6e:2x2x1
jax: 0.10.0
libtpu: 0.0.40
codegen_flags: <defaults>
</compile_context>

<pallas_src>
import jax
import jax.numpy as jnp
from jax.experimental import pallas as pl
from jax.experimental.pallas import tpu as pltpu


def energy_kernel(sigma_ref, mu_ref, x_ref, o_ref):
    # sigma, mu are f32 scalars in SMEM
    sigma = sigma_ref[0, 0]
    mu = mu_ref[0, 0]
    # compute in f32 regardless of input dtype (safe on v5e where the VPU has
    # no bf16 ALU; the extra casts are free — this kernel is HBM-bound).
    xf = x_ref[...].astype(jnp.float32)
    d = xf - mu
    o_ref[...] = (sigma * d * d).astype(o_ref.dtype)


def energy_forward(x, sigma, mu, *, target_block_bytes=2 << 20):
    """Computes sigma * (x - mu)**2 elementwise, matching Energy.forward."""
    orig_shape = x.shape
    in_dtype = x.dtype
    # PyTorch promotion: x (any dtype) combined with f32 parameters.
    out_dtype = jnp.result_type(in_dtype, jnp.float32)
    n = x.size

    # Widest lane-dense column count that divides n -> no padding in the
    # common case and unmasked, lane-dense stores.
    lanes = 128
    for cand in (2048, 1024, 512, 256, 128):
        if n % cand == 0:
            lanes = cand
            break

    x_flat = jnp.ravel(x)
    rem = n % lanes  # only nonzero when n is not a multiple of 128
    if rem:
        # pad only the sub-128-element tail (tiny), not a full tiled copy
        x_flat = jnp.pad(x_flat, (0, lanes - rem))
    rows = x_flat.size // lanes
    x2d = x_flat.reshape(rows, lanes)

    # Block sizing: ~target_block_bytes of input per grid step.
    in_itemsize = jnp.dtype(in_dtype).itemsize
    block_rows = max(1, target_block_bytes // (lanes * in_itemsize))
    if block_rows >= rows:
        block_rows = rows  # single block spanning the full row extent
    else:
        block_rows = max(8, (block_rows // 8) * 8)  # keep sublane-aligned

    grid = (pl.cdiv(rows, block_rows),)

    sigma_smem = jnp.reshape(sigma, (1, 1)).astype(jnp.float32)
    mu_smem = jnp.reshape(mu, (1, 1)).astype(jnp.float32)

    out_itemsize = jnp.dtype(out_dtype).itemsize
    cost = pl.CostEstimate(
        flops=3 * n,
        transcendentals=0,
        bytes_accessed=n * in_itemsize + n * out_itemsize,
    )

    out2d = pl.pallas_call(
        energy_kernel,
        out_shape=jax.ShapeDtypeStruct((rows, lanes), out_dtype),
        grid_spec=pltpu.PrefetchScalarGridSpec(
            num_scalar_prefetch=0,
            grid=grid,
            in_specs=[
                pl.BlockSpec(memory_space=pltpu.SMEM),  # sigma (1,1)
                pl.BlockSpec(memory_space=pltpu.SMEM),  # mu    (1,1)
                pl.BlockSpec((block_rows, lanes), lambda i: (i, 0)),
            ],
            out_specs=pl.BlockSpec((block_rows, lanes), lambda i: (i, 0)),
        ),
        compiler_params=pltpu.CompilerParams(
            dimension_semantics=("parallel",),  # shards grid across v7x's 2 TCs
        ),
        cost_estimate=cost,
    )(sigma_smem, mu_smem, x2d)

    out_flat = out2d.reshape(-1)
    if rem:
        out_flat = out_flat[:n]
    return out_flat.reshape(orig_shape)


if __name__ == "__main__":
    key = jax.random.PRNGKey(0)

    # Deterministic parameters, matching Energy.__init__:
    #   sigma = Parameter(tensor([0.5])), mu = Parameter(tensor([10.0]))
    sigma = jnp.array([0.5], dtype=jnp.float32)
    mu = jnp.array([10.0], dtype=jnp.float32)

    # Small example input consistent with the elementwise forward.
    x = jax.random.normal(key, (2, 4, 16, 16), dtype=jnp.float32) * 5.0 + 10.0

    out = energy_forward(x, sigma, mu)
    out = jax.block_until_ready(out)

    # Reference check in plain JAX (same semantics as the PyTorch forward).
    ref = sigma[0] * (x - mu[0]) * (x - mu[0])
    assert out.shape == x.shape
    assert out.dtype == ref.dtype
    assert jnp.allclose(out, ref, rtol=1e-6, atol=1e-6)

    print("KERNEL_OK")
</pallas_src>

<mosaic_0001>
module attributes {stable_mosaic.version = 11 : i64} {
  func.func @energy_kernel(%arg0: i32, %arg1: memref<1x1xf32, #tpu.memory_space<smem>>, %arg2: memref<1x1xf32, #tpu.memory_space<smem>>, %arg3: memref<1x2048xf32, #tpu.memory_space<vmem>>, %arg4: memref<1x2048xf32, #tpu.memory_space<vmem>>) attributes {dimension_semantics = [#tpu.dimension_semantics<parallel>], iteration_bounds = array<i64: 1>, scalar_prefetch = 0 : i64, scratch_operands = 0 : i64, tpu.core_type = #tpu.core_type<tc>, window_params = [{transform_indices = @transform_0, window_bounds = array<i64: 1, 1>}, {transform_indices = @transform_1, window_bounds = array<i64: 1, 1>}, {transform_indices = @transform_2, window_bounds = array<i64: 1, 2048>}, {transform_indices = @transform_3, window_bounds = array<i64: 1, 2048>}]} {
    %c0 = arith.constant 0 : index
    %c0_0 = arith.constant 0 : index
    %0 = memref.load %arg1[%c0, %c0_0] : memref<1x1xf32, #tpu.memory_space<smem>>
    %c0_1 = arith.constant 0 : index
    %c0_2 = arith.constant 0 : index
    %1 = memref.load %arg2[%c0_1, %c0_2] : memref<1x1xf32, #tpu.memory_space<smem>>
    %c0_3 = arith.constant 0 : index
    %c0_4 = arith.constant 0 : index
    %2 = vector.load %arg3[%c0_3, %c0_4] : memref<1x2048xf32, #tpu.memory_space<vmem>>, vector<1x2048xf32>
    %3 = vector.broadcast %1 : f32 to vector<1x2048xf32>
    %4 = arith.subf %2, %3 : vector<1x2048xf32>
    %5 = vector.broadcast %0 : f32 to vector<1x2048xf32>
    %6 = arith.mulf %5, %4 : vector<1x2048xf32>
    %7 = arith.mulf %6, %4 : vector<1x2048xf32>
    %c0_5 = arith.constant 0 : index
    %c0_6 = arith.constant 0 : index
    %8 = vector.load %arg4[%c0_5, %c0_6] : memref<1x2048xf32, #tpu.memory_space<vmem>>, vector<1x2048xf32>
    tpu.vector_store %arg4[%c0_5, %c0_6], %7 {strides = array<i32>} : memref<1x2048xf32, #tpu.memory_space<vmem>>, vector<1x2048xf32>,
    return
  }
  func.func @transform_0(%arg0: i32) -> (i32, i32) {
    %c0_i32 = arith.constant 0 : i32
    %c0_i32_0 = arith.constant 0 : i32
    %c0_i32_1 = arith.constant 0 : i32
    return %c0_i32, %c0_i32_0 : i32, i32
  }
  func.func @transform_1(%arg0: i32) -> (i32, i32) {
    %c0_i32 = arith.constant 0 : i32
    %c0_i32_0 = arith.constant 0 : i32
    %c0_i32_1 = arith.constant 0 : i32
    return %c0_i32, %c0_i32_0 : i32, i32
  }
  func.func @transform_2(%arg0: i32) -> (i32, i32) {
    %c0_i32 = arith.constant 0 : i32
    %c0_i32_0 = arith.constant 0 : i32
    return %arg0, %c0_i32 : i32, i32
  }
  func.func @transform_3(%arg0: i32) -> (i32, i32) {
    %c0_i32 = arith.constant 0 : i32
    %c0_i32_0 = arith.constant 0 : i32
    return %arg0, %c0_i32 : i32, i32
  }
}

</mosaic_0001>

<llo_original>
// kernel: tpu_custom_call.1
$region0: #{tpu_custom_call.1}
  #allocation0 [shape = 'u32[]', space=smem, size = 0x4, offset = 0x4, fixed_abs, tag = 'smem constant byte address 0x4 - core index']
  #allocation1 [shape = 'u32[144,128]{1,0:T(1,128)}', space=vmem, size = 0x12000, scoped, tag = 'internal scratch']
  #allocation2 [shape = 'f32[1,1]{1,0:T(1,128)S(6)}', space=smem, size = 0x200, scoped, tag = 'scoped memory for tpu_custom_call.1']
  #allocation3 [shape = 'f32[1,1]{1,0:T(1,128)S(6)}', space=smem, size = 0x200, scoped, tag = 'scoped memory for tpu_custom_call.1']
  %s0 = inlined_call_operand.<no memory space> [shape: f32[1,1], index: 0, kind: input, shape index: {}]
  %s1 = inlined_call_operand.<no memory space> [shape: f32[1,1], index: 1, kind: input, shape index: {}]
  %s2 = inlined_call_operand.hbm [shape: f32[1,2048], index: 2, kind: input, shape index: {}]
  %s3 = inlined_call_operand.hbm [shape: f32[1,2048], index: 3, kind: output, shape index: {}]
  %s4 = sld [smem:[#allocation0]]
  $region26: #{tpu_custom_call.1} parent=0
    _
  %s6 = ssub.s32 1, %s4
  %s7 = scalar_select 0, %s6, %s4
  %8 = sst [smem:[#allocation2]] %s0
  %9 = sst [smem:[#allocation3]] %s1
  $region1: #{tpu_custom_call.1} parent=0
    #allocation4 [shape = 'u8[8192]{0}', space=vmem, size = 0x2000, scoped, tag = 'input window, operand 2, single buffered']
    #allocation5 [shape = 's32[1]{0}', space=sflag, size = 0x4, scoped, tag = 'scoped memory for tpu_custom_call.1']
    #allocation6 [shape = 's32[1]{0}', space=sflag, size = 0x4, scoped, tag = 'scoped memory for tpu_custom_call.1']
    #allocation7 [shape = 'u8[8192]{0}', space=vmem, size = 0x2000, scoped, tag = 'output window, operand 0, single buffered']
    %10 = vsyncpa [#allocation5], 0
    %11 = vsyncpa [#allocation6], 0
    // Predicated region
    $region2: #{tpu_custom_call.1} parent=1 // pred_check
      _
    $region3: #{tpu_custom_call.1} parent=1 // pred_check_branch
      %13 = sbr.rel (0) target = $region5
    $region4: #{tpu_custom_call.1} parent=1 // pred_region
      _
    $region5: #{tpu_custom_call.1} parent=1 // pred_fallthru
      _
    // Predicated region
    $region6: #{tpu_custom_call.1} parent=1 // pred_check
      _
    $region7: #{tpu_custom_call.1} parent=1 // pred_check_branch
      %15 = sbr.rel (0) target = $region9
    $region8: #{tpu_custom_call.1} parent=1 // pred_region
      _
    $region9: #{tpu_custom_call.1} parent=1 // pred_fallthru
      _
    // Predicated region
    $region10: #{tpu_custom_call.1} parent=1 // pred_check
      _
    $region11: #{tpu_custom_call.1} parent=1 // pred_check_branch
      %17 = sbr.rel (0) target = $region13
    $region12: #{tpu_custom_call.1} parent=1 // pred_region
      %s19 = ssub.s32 256, 256
      %20 = vsyncadd [#allocation5], %s19
      %s22 = sshll.u32 [#allocation4], 4
      %s23 = int_to_ptr.vmem [resolvable:$true] %s22
      %25 = dma.hbm_to_vmem [thread:$0]  %s2, 256, %s23, [#allocation5]
    $region13: #{tpu_custom_call.1} parent=1 // pred_fallthru
      _
    // Predicated region
    $region14: #{tpu_custom_call.1} parent=1 // pred_check
      _
    $region15: #{tpu_custom_call.1} parent=1 // pred_check_branch
      %27 = sbr.rel (0) target = $region17
    $region16: #{tpu_custom_call.1} parent=1 // pred_region
      %28 = dma.done [#allocation5], 256
    $region17: #{tpu_custom_call.1} parent=1 // pred_fallthru
      _
    %s29 = sld [smem:[#allocation2]]
    %s30 = sld [smem:[#allocation3]]
    %v31 = vld [vmem:[#allocation4] sm:$0xff]
    %v32 = vld [vmem:[#allocation4 + $0x8] sm:$0xff]
    %v33 = vstv %s30
    %v34 = vsub.f32 %v31, %v33
    %v35 = vsub.f32 %v32, %v33
    %v36 = vstv %s29
    %v37 = vmul.f32 %v36, %v34
    %v38 = vmul.f32 %v36, %v35
    %v39 = vmul.f32 %v37, %v34
    %v40 = vmul.f32 %v38, %v35
    %41 = vst [vmem:[#allocation7] sm:$0xff] %v39
    %42 = vst [vmem:[#allocation7 + $0x8] sm:$0xff] %v40
    // Predicated region
    $region18: #{tpu_custom_call.1} parent=1 // pred_check
      _
    $region19: #{tpu_custom_call.1} parent=1 // pred_check_branch
      %44 = sbr.rel (0) target = $region21
    $region20: #{tpu_custom_call.1} parent=1 // pred_region
      %s46 = ssub.s32 256, 256
      %47 = vsyncadd [#allocation6], %s46
      %s49 = sshll.u32 [#allocation7], 4
      %s50 = int_to_ptr.vmem [resolvable:$true] %s49
      %52 = dma.vmem_to_hbm [thread:$0]  %s50, 256, %s3, [#allocation6]
    $region21: #{tpu_custom_call.1} parent=1 // pred_fallthru
      _
    // Predicated region
    $region22: #{tpu_custom_call.1} parent=1 // pred_check
      _
    $region23: #{tpu_custom_call.1} parent=1 // pred_check_branch
      %54 = sbr.rel (0) target = $region25
    $region24: #{tpu_custom_call.1} parent=1 // pred_region
      %55 = dma.done [#allocation6], 256
    $region25: #{tpu_custom_call.1} parent=1 // pred_fallthru
      _
    %56 = vsyncpa [#allocation5], 1
    %57 = vsyncpa [#allocation6], 1

</llo_original>
